<compile_context>
chip_gen: v7x
topology: tpu7x:2x2x1
jax: 0.10.0
libtpu: 0.0.40
codegen_flags: <defaults>
</compile_context>

<pallas_src>
import jax
import jax.numpy as jnp
from jax.experimental import pallas as pl
from jax.experimental.pallas import tpu as pltpu


def _interact_kernel(x_ref, y_ref, wx_ref, wy_ref, xo_ref, yo_ref):
    # x_ref:  (Bt, Lx, D) sequence for modality X
    # y_ref:  (Bt, Ly, D) sequence for modality Y
    # wx_ref: (D, 4D) = [Wq0 * 1/sqrt(D) | Wk1 | Wv1 | Wo0]   (x-side fused slab)
    # wy_ref: (D, 4D) = [Wq1 * 1/sqrt(D) | Wk0 | Wv0 | Wo1]   (y-side fused slab)
    bt, lx, d = x_ref.shape
    _, ly, _ = y_ref.shape

    # Flatten batch into the row dim so each side is ONE MXU projection.
    x2 = x_ref[...].astype(jnp.float32).reshape(bt * lx, d)          # (Bt*Lx, D)
    y2 = y_ref[...].astype(jnp.float32).reshape(bt * ly, d)          # (Bt*Ly, D)

    # Lane-dense (D x 4D = 32 x 128) slabs; the Wo columns in the result are
    # unused (free MXU work) but keep loads/results 128-lane dense.
    xp = jnp.dot(x2, wx_ref[...], preferred_element_type=jnp.float32)  # (Bt*Lx, 4D)
    yp = jnp.dot(y2, wy_ref[...], preferred_element_type=jnp.float32)  # (Bt*Ly, 4D)

    q0 = xp[:, 0 * d:1 * d].reshape(bt, lx, d)    # op0 queries   (from x)
    k1 = xp[:, 1 * d:2 * d].reshape(bt, lx, d)    # op1 keys      (from x)
    v1 = xp[:, 2 * d:3 * d].reshape(bt, lx, d)    # op1 values    (from x)

    q1 = yp[:, 0 * d:1 * d].reshape(bt, ly, d)    # op1 queries   (from y)
    k0 = yp[:, 1 * d:2 * d].reshape(bt, ly, d)    # op0 keys      (from y)
    v0 = yp[:, 2 * d:3 * d].reshape(bt, ly, d)    # op0 values    (from y)

    wo0 = wx_ref[:, 3 * d:]                       # (D, D) output proj for op0
    wo1 = wy_ref[:, 3 * d:]                       # (D, D) output proj for op1

    def attend(q, k, v, wo, out_ref):
        lq = q.shape[1]
        # Batched q @ k^T, no explicit transpose materialized.
        s = jnp.einsum("bqd,bkd->bqk", q, k,
                       preferred_element_type=jnp.float32)            # (Bt, Lq, Lk)
        m = jnp.max(s, axis=-1, keepdims=True)                        # stable softmax
        p = jnp.exp(s - m)
        a = p / jnp.sum(p, axis=-1, keepdims=True)                    # exact division
        ctx = jnp.einsum("bqk,bkd->bqd", a, v,
                         preferred_element_type=jnp.float32)          # (Bt, Lq, D)
        # Flatten batch again so the output projection is one matmul.
        o = jnp.dot(ctx.reshape(bt * lq, d), wo,
                    preferred_element_type=jnp.float32)
        out_ref[...] = o.reshape(bt, lq, d).astype(out_ref.dtype)

    attend(q0, k0, v0, wo0, xo_ref)    # op0(x, y)
    attend(q1, k1, v1, wo1, yo_ref)    # op1(y, x)


def interact_full_forward(x, y, fused_params, block_b=None):
    """Mirrors Interact_Full.forward: (op0(x, y), op1(y, x)) in one pallas_call.

    x: [B, Lx, D], y: [B, Ly, D]; fused_params from prepare_interact_params().
    block_b: batch elements per grid step (default: all of B -> collapsed grid).
    """
    wx, wy = fused_params
    B, Lx, D = x.shape
    _, Ly, _ = y.shape

    if block_b is None:
        block_b = B           # collapse the grid entirely for small B
    assert B % block_b == 0, "block_b must divide B"
    n_steps = B // block_b

    return pl.pallas_call(
        _interact_kernel,
        out_shape=(
            jax.ShapeDtypeStruct((B, Lx, D), x.dtype),
            jax.ShapeDtypeStruct((B, Ly, D), y.dtype),
        ),
        grid_spec=pl.GridSpec(
            grid=(n_steps,),
            in_specs=[
                pl.BlockSpec((block_b, Lx, D), lambda b: (b, 0, 0)),   # x batch block
                pl.BlockSpec((block_b, Ly, D), lambda b: (b, 0, 0)),   # y batch block
                pl.BlockSpec((D, 4 * D), lambda b: (0, 0)),            # x-side weight slab
                pl.BlockSpec((D, 4 * D), lambda b: (0, 0)),            # y-side weight slab
            ],
            out_specs=(
                pl.BlockSpec((block_b, Lx, D), lambda b: (b, 0, 0)),
                pl.BlockSpec((block_b, Ly, D), lambda b: (b, 0, 0)),
            ),
        ),
        # Collapsed grid: "parallel" buys nothing for a size-1 grid; when
        # batch-blocked (block_b < B) the steps are independent -> parallel.
        compiler_params=pltpu.CompilerParams(
            dimension_semantics=("arbitrary",) if n_steps == 1 else ("parallel",)),
    )(x, y, wx, wy)


def init_interact_full_params(key, hidden_dim):
    """Two independent interaction operators (one per direction): (Wq, Wk, Wv, Wo) each."""
    scale = 1.0 / jnp.sqrt(jnp.float32(hidden_dim))
    keys = jax.random.split(key, 8)

    def proj(k):
        return jax.random.normal(k, (hidden_dim, hidden_dim), jnp.float32) * scale

    op0 = tuple(proj(k) for k in keys[0:4])   # Wq, Wk, Wv, Wo for InterOperators[0]
    op1 = tuple(proj(k) for k in keys[4:8])   # Wq, Wk, Wv, Wo for InterOperators[1]
    return op0, op1


def prepare_interact_params(params):
    """One-time weight fusion: fold 1/sqrt(D) into Wq and pack lane-dense per-side
    slabs [Wq | Wk | Wv | Wo] of shape (D, 4D)."""
    (wq0, wk0, wv0, wo0), (wq1, wk1, wv1, wo1) = params
    d = wq0.shape[0]
    inv_sqrt_d = 1.0 / jnp.sqrt(jnp.float32(d))
    wx = jnp.concatenate([wq0 * inv_sqrt_d, wk1, wv1, wo0], axis=1)   # x side: q0|k1|v1|Wo0
    wy = jnp.concatenate([wq1 * inv_sqrt_d, wk0, wv0, wo1], axis=1)   # y side: q1|k0|v0|Wo1
    return wx, wy


def _reference_cross_attention(x, y, p):
    """Pure-JAX reference for one guided-attention operator (queries from x)."""
    wq, wk, wv, wo = p
    q = x @ wq
    k = y @ wk
    v = y @ wv
    s = jnp.einsum("bqd,bkd->bqk", q, k) / jnp.sqrt(jnp.float32(x.shape[-1]))
    a = jax.nn.softmax(s, axis=-1)
    return jnp.einsum("bqk,bkd->bqd", a, v) @ wo


if __name__ == "__main__":
    key = jax.random.PRNGKey(0)
    kx, ky, kp = jax.random.split(key, 3)

    B, Lx, Ly, D = 2, 8, 16, 32
    x = jax.random.normal(kx, (B, Lx, D), jnp.float32)   # modality X sequence
    y = jax.random.normal(ky, (B, Ly, D), jnp.float32)   # modality Y sequence

    raw_params = init_interact_full_params(kp, D)
    fused_params = prepare_interact_params(raw_params)

    xout, yout = interact_full_forward(x, y, fused_params)
    jax.block_until_ready((xout, yout))

    assert xout.shape == (B, Lx, D) and yout.shape == (B, Ly, D)

    # Correctness vs pure-JAX reference (exact softmax normalization -> tight tol).
    xref = _reference_cross_attention(x, y, raw_params[0])
    yref = _reference_cross_attention(y, x, raw_params[1])
    assert jnp.allclose(xout, xref, atol=1e-4, rtol=1e-4)
    assert jnp.allclose(yout, yref, atol=1e-4, rtol=1e-4)

    print("KERNEL_OK")
</pallas_src>

<mosaic_0001>
module attributes {stable_mosaic.version = 11 : i64} {
  func.func @_interact_kernel(%arg0: i32, %arg1: memref<2x8x32xf32, #tpu.memory_space<vmem>>, %arg2: memref<2x16x32xf32, #tpu.memory_space<vmem>>, %arg3: memref<32x128xf32, #tpu.memory_space<vmem>>, %arg4: memref<32x128xf32, #tpu.memory_space<vmem>>, %arg5: memref<2x8x32xf32, #tpu.memory_space<vmem>>, %arg6: memref<2x16x32xf32, #tpu.memory_space<vmem>>) attributes {dimension_semantics = [#tpu.dimension_semantics<arbitrary>], iteration_bounds = array<i64: 1>, scalar_prefetch = 0 : i64, scratch_operands = 0 : i64, tpu.core_type = #tpu.core_type<tc>, window_params = [{transform_indices = @transform_0, window_bounds = array<i64: 2, 8, 32>}, {transform_indices = @transform_1, window_bounds = array<i64: 2, 16, 32>}, {pipeline_mode = #tpu.pipeline_mode<synchronous>, transform_indices = @transform_2, window_bounds = array<i64: 32, 128>}, {pipeline_mode = #tpu.pipeline_mode<synchronous>, transform_indices = @transform_3, window_bounds = array<i64: 32, 128>}, {transform_indices = @transform_4, window_bounds = array<i64: 2, 8, 32>}, {transform_indices = @transform_5, window_bounds = array<i64: 2, 16, 32>}]} {
    %c0 = arith.constant 0 : index
    %c0_0 = arith.constant 0 : index
    %c0_1 = arith.constant 0 : index
    %0 = vector.load %arg1[%c0, %c0_0, %c0_1] : memref<2x8x32xf32, #tpu.memory_space<vmem>>, vector<2x8x32xf32>
    %1 = vector.shape_cast %0 : vector<2x8x32xf32> to vector<16x32xf32>
    %c0_2 = arith.constant 0 : index
    %c0_3 = arith.constant 0 : index
    %c0_4 = arith.constant 0 : index
    %2 = vector.load %arg2[%c0_2, %c0_3, %c0_4] : memref<2x16x32xf32, #tpu.memory_space<vmem>>, vector<2x16x32xf32>
    %3 = vector.shape_cast %2 : vector<2x16x32xf32> to vector<32x32xf32>
    %c0_5 = arith.constant 0 : index
    %c0_6 = arith.constant 0 : index
    %4 = vector.load %arg3[%c0_5, %c0_6] : memref<32x128xf32, #tpu.memory_space<vmem>>, vector<32x128xf32>
    %cst = arith.constant dense<0.000000e+00> : vector<16x128xf32>
    %5 = tpu.matmul %1, %4, %cst {dimension_numbers = #tpu.dot_dimension_numbers<[1], [0], [0], [1], [0, 0, 1, 1], [], []>} : vector<16x32xf32>, vector<32x128xf32>, vector<16x128xf32> -> vector<16x128xf32>
    %c0_7 = arith.constant 0 : index
    %c0_8 = arith.constant 0 : index
    %6 = vector.load %arg4[%c0_7, %c0_8] : memref<32x128xf32, #tpu.memory_space<vmem>>, vector<32x128xf32>
    %cst_9 = arith.constant dense<0.000000e+00> : vector<32x128xf32>
    %7 = tpu.matmul %3, %6, %cst_9 {dimension_numbers = #tpu.dot_dimension_numbers<[1], [0], [0], [1], [0, 0, 1, 1], [], []>} : vector<32x32xf32>, vector<32x128xf32>, vector<32x128xf32> -> vector<32x128xf32>
    %8 = vector.extract_strided_slice %5 {offsets = [0, 0], sizes = [16, 32], strides = [1, 1]} : vector<16x128xf32> to vector<16x32xf32>
    %9 = vector.shape_cast %8 : vector<16x32xf32> to vector<2x8x32xf32>
    %10 = vector.extract_strided_slice %5 {offsets = [0, 32], sizes = [16, 32], strides = [1, 1]} : vector<16x128xf32> to vector<16x32xf32>
    %11 = vector.shape_cast %10 : vector<16x32xf32> to vector<2x8x32xf32>
    %12 = vector.extract_strided_slice %5 {offsets = [0, 64], sizes = [16, 32], strides = [1, 1]} : vector<16x128xf32> to vector<16x32xf32>
    %13 = vector.shape_cast %12 : vector<16x32xf32> to vector<2x8x32xf32>
    %14 = vector.extract_strided_slice %7 {offsets = [0, 0], sizes = [32, 32], strides = [1, 1]} : vector<32x128xf32> to vector<32x32xf32>
    %15 = vector.shape_cast %14 : vector<32x32xf32> to vector<2x16x32xf32>
    %16 = vector.extract_strided_slice %7 {offsets = [0, 32], sizes = [32, 32], strides = [1, 1]} : vector<32x128xf32> to vector<32x32xf32>
    %17 = vector.shape_cast %16 : vector<32x32xf32> to vector<2x16x32xf32>
    %18 = vector.extract_strided_slice %7 {offsets = [0, 64], sizes = [32, 32], strides = [1, 1]} : vector<32x128xf32> to vector<32x32xf32>
    %19 = vector.shape_cast %18 : vector<32x32xf32> to vector<2x16x32xf32>
    %c0_10 = arith.constant 0 : index
    %c96 = arith.constant 96 : index
    %20 = vector.load %arg3[%c0_10, %c96] : memref<32x128xf32, #tpu.memory_space<vmem>>, vector<32x32xf32>
    %c0_11 = arith.constant 0 : index
    %c96_12 = arith.constant 96 : index
    %21 = vector.load %arg4[%c0_11, %c96_12] : memref<32x128xf32, #tpu.memory_space<vmem>>, vector<32x32xf32>
    "tpu.trace_start"() <{level = 10 : i32, message = "bqd,bkd->bqk"}> : () -> ()
    %cst_13 = arith.constant dense<0.000000e+00> : vector<2x8x16xf32>
    %22 = tpu.matmul %9, %17, %cst_13 {dimension_numbers = #tpu.dot_dimension_numbers<[2], [2], [1], [1], [0, 0, 0, 1, 1, 1], [0], [0]>} : vector<2x8x32xf32>, vector<2x16x32xf32>, vector<2x8x16xf32> -> vector<2x8x16xf32>
    "tpu.trace_stop"() : () -> ()
    %cst_14 = arith.constant dense<0xFF800000> : vector<2x8xf32>
    %23 = vector.multi_reduction <maximumf>, %22, %cst_14 [2] : vector<2x8x16xf32> to vector<2x8xf32>
    %24 = vector.shape_cast %23 : vector<2x8xf32> to vector<2x8x1xf32>
    %25 = vector.broadcast %24 : vector<2x8x1xf32> to vector<2x8x16xf32>
    %26 = arith.subf %22, %25 : vector<2x8x16xf32>
    %27 = math.exp %26 : vector<2x8x16xf32>
    %cst_15 = arith.constant dense<0.000000e+00> : vector<2x8xf32>
    %28 = vector.multi_reduction <add>, %27, %cst_15 [2] : vector<2x8x16xf32> to vector<2x8xf32>
    %29 = vector.shape_cast %28 : vector<2x8xf32> to vector<2x8x1xf32>
    %30 = vector.broadcast %29 : vector<2x8x1xf32> to vector<2x8x16xf32>
    %31 = arith.divf %27, %30 : vector<2x8x16xf32>
    "tpu.trace_start"() <{level = 10 : i32, message = "bqk,bkd->bqd"}> : () -> ()
    %cst_16 = arith.constant dense<0.000000e+00> : vector<2x8x32xf32>
    %32 = tpu.matmul %31, %19, %cst_16 {dimension_numbers = #tpu.dot_dimension_numbers<[2], [1], [1], [2], [0, 0, 0, 1, 1, 2], [0], [0]>} : vector<2x8x16xf32>, vector<2x16x32xf32>, vector<2x8x32xf32> -> vector<2x8x32xf32>
    "tpu.trace_stop"() : () -> ()
    %33 = vector.shape_cast %32 : vector<2x8x32xf32> to vector<16x32xf32>
    %cst_17 = arith.constant dense<0.000000e+00> : vector<16x32xf32>
    %34 = tpu.matmul %33, %20, %cst_17 {dimension_numbers = #tpu.dot_dimension_numbers<[1], [0], [0], [1], [0, 0, 1, 1], [], []>} : vector<16x32xf32>, vector<32x32xf32>, vector<16x32xf32> -> vector<16x32xf32>
    %35 = vector.shape_cast %34 : vector<16x32xf32> to vector<2x8x32xf32>
    %c0_18 = arith.constant 0 : index
    %c0_19 = arith.constant 0 : index
    %c0_20 = arith.constant 0 : index
    %36 = vector.load %arg5[%c0_18, %c0_19, %c0_20] : memref<2x8x32xf32, #tpu.memory_space<vmem>>, vector<2x8x32xf32>
    tpu.vector_store %arg5[%c0_18, %c0_19, %c0_20], %35 {strides = array<i32>} : memref<2x8x32xf32, #tpu.memory_space<vmem>>, vector<2x8x32xf32>,
    "tpu.trace_start"() <{level = 10 : i32, message = "bqd,bkd->bqk"}> : () -> ()
    %cst_21 = arith.constant dense<0.000000e+00> : vector<2x16x8xf32>
    %37 = tpu.matmul %15, %11, %cst_21 {dimension_numbers = #tpu.dot_dimension_numbers<[2], [2], [1], [1], [0, 0, 0, 1, 1, 1], [0], [0]>} : vector<2x16x32xf32>, vector<2x8x32xf32>, vector<2x16x8xf32> -> vector<2x16x8xf32>
    "tpu.trace_stop"() : () -> ()
    %cst_22 = arith.constant dense<0xFF800000> : vector<2x16xf32>
    %38 = vector.multi_reduction <maximumf>, %37, %cst_22 [2] : vector<2x16x8xf32> to vector<2x16xf32>
    %39 = vector.shape_cast %38 : vector<2x16xf32> to vector<2x16x1xf32>
    %40 = vector.broadcast %39 : vector<2x16x1xf32> to vector<2x16x8xf32>
    %41 = arith.subf %37, %40 : vector<2x16x8xf32>
    %42 = math.exp %41 : vector<2x16x8xf32>
    %cst_23 = arith.constant dense<0.000000e+00> : vector<2x16xf32>
    %43 = vector.multi_reduction <add>, %42, %cst_23 [2] : vector<2x16x8xf32> to vector<2x16xf32>
    %44 = vector.shape_cast %43 : vector<2x16xf32> to vector<2x16x1xf32>
    %45 = vector.broadcast %44 : vector<2x16x1xf32> to vector<2x16x8xf32>
    %46 = arith.divf %42, %45 : vector<2x16x8xf32>
    "tpu.trace_start"() <{level = 10 : i32, message = "bqk,bkd->bqd"}> : () -> ()
    %cst_24 = arith.constant dense<0.000000e+00> : vector<2x16x32xf32>
    %47 = tpu.matmul %46, %13, %cst_24 {dimension_numbers = #tpu.dot_dimension_numbers<[2], [1], [1], [2], [0, 0, 0, 1, 1, 2], [0], [0]>} : vector<2x16x8xf32>, vector<2x8x32xf32>, vector<2x16x32xf32> -> vector<2x16x32xf32>
    "tpu.trace_stop"() : () -> ()
    %48 = vector.shape_cast %47 : vector<2x16x32xf32> to vector<32x32xf32>
    %cst_25 = arith.constant dense<0.000000e+00> : vector<32x32xf32>
    %49 = tpu.matmul %48, %21, %cst_25 {dimension_numbers = #tpu.dot_dimension_numbers<[1], [0], [0], [1], [0, 0, 1, 1], [], []>} : vector<32x32xf32>, vector<32x32xf32>, vector<32x32xf32> -> vector<32x32xf32>
    %50 = vector.shape_cast %49 : vector<32x32xf32> to vector<2x16x32xf32>
    %c0_26 = arith.constant 0 : index
    %c0_27 = arith.constant 0 : index
    %c0_28 = arith.constant 0 : index
    %51 = vector.load %arg6[%c0_26, %c0_27, %c0_28] : memref<2x16x32xf32, #tpu.memory_space<vmem>>, vector<2x16x32xf32>
    tpu.vector_store %arg6[%c0_26, %c0_27, %c0_28], %50 {strides = array<i32>} : memref<2x16x32xf32, #tpu.memory_space<vmem>>, vector<2x16x32xf32>,
    return
  }
  func.func @transform_0(%arg0: i32) -> (i32, i32, i32) {
    %c0_i32 = arith.constant 0 : i32
    %c0_i32_0 = arith.constant 0 : i32
    %c0_i32_1 = arith.constant 0 : i32
    return %arg0, %c0_i32, %c0_i32_0 : i32, i32, i32
  }
  func.func @transform_1(%arg0: i32) -> (i32, i32, i32) {
    %c0_i32 = arith.constant 0 : i32
    %c0_i32_0 = arith.constant 0 : i32
    %c0_i32_1 = arith.constant 0 : i32
    return %arg0, %c0_i32, %c0_i32_0 : i32, i32, i32
  }
  func.func @transform_2(%arg0: i32) -> (i32, i32) {
    %c0_i32 = arith.constant 0 : i32
    %c0_i32_0 = arith.constant 0 : i32
    %c0_i32_1 = arith.constant 0 : i32
    return %c0_i32, %c0_i32_0 : i32, i32
  }
  func.func @transform_3(%arg0: i32) -> (i32, i32) {
    %c0_i32 = arith.constant 0 : i32
    %c0_i32_0 = arith.constant 0 : i32
    %c0_i32_1 = arith.constant 0 : i32
    return %c0_i32, %c0_i32_0 : i32, i32
  }
  func.func @transform_4(%arg0: i32) -> (i32, i32, i32) {
    %c0_i32 = arith.constant 0 : i32
    %c0_i32_0 = arith.constant 0 : i32
    %c0_i32_1 = arith.constant 0 : i32
    return %arg0, %c0_i32, %c0_i32_0 : i32, i32, i32
  }
  func.func @transform_5(%arg0: i32) -> (i32, i32, i32) {
    %c0_i32 = arith.constant 0 : i32
    %c0_i32_0 = arith.constant 0 : i32
    %c0_i32_1 = arith.constant 0 : i32
    return %arg0, %c0_i32, %c0_i32_0 : i32, i32, i32
  }
}

</mosaic_0001>

<llo_original>
// kernel: tpu_custom_call.1
$region0: #{tpu_custom_call.1}
  #allocation0 [shape = 'u32[]', space=smem, size = 0x4, offset = 0x4, fixed_abs, tag = 'smem constant byte address 0x4 - core index']
  #allocation1 [shape = 'u32[144,128]{1,0:T(1,128)}', space=vmem, size = 0x12000, scoped, tag = 'internal scratch']
  %s0 = inlined_call_operand.hbm [shape: f32[2,8,32], index: 0, kind: input, shape index: {}]
  %s1 = inlined_call_operand.hbm [shape: f32[2,16,32], index: 1, kind: input, shape index: {}]
  %s2 = inlined_call_operand.hbm [shape: f32[32,128], index: 2, kind: input, shape index: {}]
  %s3 = inlined_call_operand.hbm [shape: f32[32,128], index: 3, kind: input, shape index: {}]
  %s4 = inlined_call_operand.hbm [shape: f32[2,8,32], index: 4, kind: output, shape index: {0}]
  %s5 = inlined_call_operand.hbm [shape: f32[2,16,32], index: 5, kind: output, shape index: {1}]
  %6 = xla_tuple %s4, %s5
  %s7 = sld [smem:[#allocation0]]
  $region50: #{tpu_custom_call.1} parent=0
    _
  %s9 = ssub.s32 1, %s7
  %s10 = scalar_select 0, %s9, %s7
  $region1: #{tpu_custom_call.1} parent=0
    #allocation2 [shape = 'u8[8192]{0}', space=vmem, size = 0x2000, scoped, tag = 'input window, operand 0, single buffered']
    #allocation3 [shape = 's32[1]{0}', space=sflag, size = 0x4, scoped, tag = 'scoped memory for tpu_custom_call.1']
    #allocation4 [shape = 's32[1]{0}', space=sflag, size = 0x4, scoped, tag = 'scoped memory for tpu_custom_call.1']
    #allocation5 [shape = 'u8[16384]{0}', space=vmem, size = 0x4000, scoped, tag = 'input window, operand 1, single buffered']
    #allocation6 [shape = 's32[1]{0}', space=sflag, size = 0x4, scoped, tag = 'scoped memory for tpu_custom_call.1']
    #allocation7 [shape = 'u8[16384]{0}', space=vmem, size = 0x4000, scoped, tag = 'input window, operand 2, single buffered']
    #allocation8 [shape = 'u8[16384]{0}', space=vmem, size = 0x4000, scoped, tag = 'input window, operand 3, single buffered']
    #allocation9 [shape = 's32[1]{0}', space=sflag, size = 0x4, scoped, tag = 'scoped memory for tpu_custom_call.1']
    #allocation10 [shape = 'u8[8192]{0}', space=vmem, size = 0x2000, scoped, tag = 'output window, operand 0, single buffered']
    #allocation11 [shape = 'u8[16384]{0}', space=vmem, size = 0x4000, scoped, tag = 'output window, operand 1, single buffered']
    #allocation12 [shape = 's32[1]{0}', space=sflag, size = 0x4, scoped, tag = 'scoped memory for tpu_custom_call.1']
    %11 = vsyncpa [#allocation3], 0
    %12 = vsyncpa [#allocation6], 0
    %13 = vsyncpa [#allocation9], 0
    %14 = vsyncpa [#allocation4], 0
    %15 = vsyncpa [#allocation12], 0
    // Predicated region
    $region2: #{tpu_custom_call.1} parent=1 // pred_check
      _
    $region3: #{tpu_custom_call.1} parent=1 // pred_check_branch
      %17 = sbr.rel (0) target = $region5
    $region4: #{tpu_custom_call.1} parent=1 // pred_region
      %s19 = ssub.s32 256, 256
      %20 = vsyncadd [#allocation3], %s19
      %s21 = sshll.u32 [#allocation2], 4
      %s22 = int_to_ptr.vmem [resolvable:$true] %s21
      %27 = dma.hbm_to_vmem [thread:$0]  %s0, 256, %s22, [#allocation3], 128, 128, 8
    $region5: #{tpu_custom_call.1} parent=1 // pred_fallthru
      _
    // Predicated region
    $region6: #{tpu_custom_call.1} parent=1 // pred_check
      _
    $region7: #{tpu_custom_call.1} parent=1 // pred_check_branch
      %29 = sbr.rel (0) target = $region9
    $region8: #{tpu_custom_call.1} parent=1 // pred_region
      %s31 = ssub.s32 512, 512
      %32 = vsyncadd [#allocation6], %s31
      %s33 = sshll.u32 [#allocation5], 4
      %s34 = int_to_ptr.vmem [resolvable:$true] %s33
      %39 = dma.hbm_to_vmem [thread:$0]  %s1, 512, %s34, [#allocation6], 128, 128, 8
    $region9: #{tpu_custom_call.1} parent=1 // pred_fallthru
      _
    // Predicated region
    $region10: #{tpu_custom_call.1} parent=1 // pred_check
      _
    $region11: #{tpu_custom_call.1} parent=1 // pred_check_branch
      %41 = sbr.rel (0) target = $region13
    $region12: #{tpu_custom_call.1} parent=1 // pred_region
      %s43 = ssub.s32 512, 512
      %44 = vsyncadd [#allocation6], %s43
      %s45 = sshll.u32 [#allocation7], 4
      %s46 = int_to_ptr.vmem [resolvable:$true] %s45
      %51 = dma.hbm_to_vmem [thread:$0]  %s2, 512, %s46, [#allocation6], 128, 128, 8
    $region13: #{tpu_custom_call.1} parent=1 // pred_fallthru
      _
    // Predicated region
    $region14: #{tpu_custom_call.1} parent=1 // pred_check
      _
    $region15: #{tpu_custom_call.1} parent=1 // pred_check_branch
      %53 = sbr.rel (0) target = $region17
    $region16: #{tpu_custom_call.1} parent=1 // pred_region
      %s55 = ssub.s32 512, 512
      %56 = vsyncadd [#allocation9], %s55
      %s57 = sshll.u32 [#allocation8], 4
      %s58 = int_to_ptr.vmem [resolvable:$true] %s57
      %63 = dma.hbm_to_vmem [thread:$0]  %s3, 512, %s58, [#allocation9], 128, 128, 8
    $region17: #{tpu_custom_call.1} parent=1 // pred_fallthru
      _
    // Predicated region
    $region18: #{tpu_custom_call.1} parent=1 // pred_check
      _
    $region19: #{tpu_custom_call.1} parent=1 // pred_check_branch
      %65 = sbr.rel (0) target = $region21
    $region20: #{tpu_custom_call.1} parent=1 // pred_region
      %66 = dma.done [#allocation3], 256
    $region21: #{tpu_custom_call.1} parent=1 // pred_fallthru
      _
    // Predicated region
    $region22: #{tpu_custom_call.1} parent=1 // pred_check
      _
    $region23: #{tpu_custom_call.1} parent=1 // pred_check_branch
      %68 = sbr.rel (0) target = $region25
    $region24: #{tpu_custom_call.1} parent=1 // pred_region
      %69 = dma.done [#allocation6], 512
    $region25: #{tpu_custom_call.1} parent=1 // pred_fallthru
      _
    // Predicated region
    $region26: #{tpu_custom_call.1} parent=1 // pred_check
      _
    $region27: #{tpu_custom_call.1} parent=1 // pred_check_branch
      %71 = sbr.rel (0) target = $region29
    $region28: #{tpu_custom_call.1} parent=1 // pred_region
      %72 = dma.done [#allocation6], 512
    $region29: #{tpu_custom_call.1} parent=1 // pred_fallthru
      _
    // Predicated region
    $region30: #{tpu_custom_call.1} parent=1 // pred_check
      _
    $region31: #{tpu_custom_call.1} parent=1 // pred_check_branch
      %74 = sbr.rel (0) target = $region33
    $region32: #{tpu_custom_call.1} parent=1 // pred_region
      %75 = dma.done [#allocation9], 512
    $region33: #{tpu_custom_call.1} parent=1 // pred_fallthru
      _
    %v76 = vld [vmem:[#allocation2] sm:$0xff]
    %v77 = vld [vmem:[#allocation2 + $0x8] sm:$0xff]
    %v78 = vld [vmem:[#allocation5] sm:$0xff]
    %v79 = vld [vmem:[#allocation5 + $0x8] sm:$0xff]
    %v80 = vld [vmem:[#allocation5 + $0x10] sm:$0xff]
    %v81 = vld [vmem:[#allocation5 + $0x18] sm:$0xff]
    %v82 = vld [vmem:[#allocation7] sm:$0xff]
    %v83 = vld [vmem:[#allocation7 + $0x8] sm:$0xff]
    %v84 = vld [vmem:[#allocation7 + $0x10] sm:$0xff]
    %v85 = vld [vmem:[#allocation7 + $0x18] sm:$0xff]
    %vm86 = vcmask 261120
    %v88 = vsel %vm86, %v76, 0
    %v91 = vsel %vm86, %v77, 0
    %93 = vmatprep.subr.mxu0 0.0
    %94 = vmatpush1.msra.mxu0 %v82
    %95 = vmatprep.subr.mxu0 0.0
    %96 = vmatpush1.msra.mxu0 %v83
    %97 = vmatprep.subr.mxu0 0.0
    %98 = vmatpush1.msra.mxu0 %v84
    %99 = vmatprep.subr.mxu0 0.0
    %100 = vmatpush1.msra.mxu0 %v85
    %101 = vmatprep.subr.mxu0 0.0
    %102 = vmatpush1.msra.mxu0 0.0
    %103 = vmatprep.subr.mxu0 0.0
    %104 = vmatpush1.msra.mxu0 0.0
    %105 = vmatprep.subr.mxu0 0.0
    %106 = vmatpush1.msra.mxu0 0.0
    %107 = vmatprep.subr.mxu0 0.0
    %108 = vmatpush1.msra.mxu0 0.0
    %109 = vmatprep.subr.mxu0 0.0
    %110 = vmatpush1.msra.mxu0 0.0
    %111 = vmatprep.subr.mxu0 0.0
    %112 = vmatpush1.msra.mxu0 0.0
    %113 = vmatprep.subr.mxu0 0.0
    %114 = vmatpush1.msra.mxu0 0.0
    %115 = vmatprep.subr.mxu0 0.0
    %116 = vmatpush1.msra.mxu0 0.0
    %117 = vmatprep.subr.mxu0 0.0
    %118 = vmatpush1.msra.mxu0 0.0
    %119 = vmatprep.subr.mxu0 0.0
    %120 = vmatpush1.msra.mxu0 0.0
    %121 = vmatprep.subr.mxu0 0.0
    %122 = vmatpush1.msra.mxu0 0.0
    %123 = vmatprep.subr.mxu0 0.0
    %124 = vmatpush1.msra.mxu0 0.0
    %125 = vmatprep.subr.mxu0 0.0
    %126 = vmatpush1.msra.mxu0 0.0
    %127 = vmatprep.subr.mxu0 0.0
    %128 = vmatpush1.msra.mxu0 0.0
    %129 = vmatprep.subr.mxu0 0.0
    %130 = vmatpush1.msra.mxu0 0.0
    %131 = vmatprep.subr.mxu0 0.0
    %132 = vmatpush1.msra.mxu0 0.0
    %133 = vmatprep.subr.mxu0 0.0
    %134 = vmatpush1.msra.mxu0 0.0
    %135 = vmatprep.subr.mxu0 0.0
    %136 = vmatpush1.msra.mxu0 0.0
    %137 = vmatprep.subr.mxu0 0.0
    %138 = vmatpush1.msra.mxu0 0.0
    %139 = vmatprep.subr.mxu0 0.0
    %140 = vmatpush1.msra.mxu0 0.0
    %141 = vmatprep.subr.mxu0 0.0
    %142 = vmatpush1.msra.mxu0 0.0
    %143 = vmatprep.subr.mxu0 0.0
    %144 = vmatpush1.msra.mxu0 0.0
    %145 = vmatprep.subr.mxu0 0.0
    %146 = vmatpush1.msra.mxu0 0.0
    %147 = vmatprep.subr.mxu0 0.0
    %148 = vmatpush1.msra.mxu0 0.0
    %149 = vmatprep.subr.mxu0 0.0
    %150 = vmatpush1.msra.mxu0 0.0
    %151 = vmatprep.subr.mxu0 0.0
    %152 = vmatpush1.msra.mxu0 0.0
    %153 = vmatprep.subr.mxu0 0.0
    %154 = vmatpush1.msra.mxu0 0.0
    %155 = vmatprep.subr.mxu0 0.0
    %156 = vmatpush1.msra.mxu0 0.0
    %157 = vmatprep.mubr.f32.mxu0 0.0
    %158 = vmatmul.mubr.f32.gmra.mrb[0].mxu0 %v88
    %v159 = vpop.f32.mrb[0].mxu0
    %v160 = vadd.f32 0.0, %v159
    %v161 = vpop.f32.mrb[0].mxu0
    %162 = vmatprep.mubr.f32.mxu0 0.0
    %163 = vmatmul.mubr.f32.gmra.mrb[0].mxu0 %v91
    %v164 = vpop.f32.mrb[0].mxu0
    %v165 = vadd.f32 0.0, %v164
    %v166 = vpop.f32.mrb[0].mxu0
    %167 = vdwg.mxu0
    %v168 = vld [vmem:[#allocation8] sm:$0xff]
    %v169 = vld [vmem:[#allocation8 + $0x8] sm:$0xff]
    %v170 = vld [vmem:[#allocation8 + $0x10] sm:$0xff]
    %v171 = vld [vmem:[#allocation8 + $0x18] sm:$0xff]
    %v173 = vsel %vm86, %v78, 0
    %v176 = vsel %vm86, %v79, 0
    %v179 = vsel %vm86, %v80, 0
    %v182 = vsel %vm86, %v81, 0
    %184 = vmatprep.subr.mxu0 0.0
    %185 = vmatpush1.msra.mxu0 %v168
    %186 = vmatprep.subr.mxu0 0.0
    %187 = vmatpush1.msra.mxu0 %v169
    %188 = vmatprep.subr.mxu0 0.0
    %189 = vmatpush1.msra.mxu0 %v170
    %190 = vmatprep.subr.mxu0 0.0
    %191 = vmatpush1.msra.mxu0 %v171
    %192 = vmatprep.subr.mxu0 0.0
    %193 = vmatpush1.msra.mxu0 0.0
    %194 = vmatprep.subr.mxu0 0.0
    %195 = vmatpush1.msra.mxu0 0.0
    %196 = vmatprep.subr.mxu0 0.0
    %197 = vmatpush1.msra.mxu0 0.0
    %198 = vmatprep.subr.mxu0 0.0
    %199 = vmatpush1.msra.mxu0 0.0
    %200 = vmatprep.subr.mxu0 0.0
    %201 = vmatpush1.msra.mxu0 0.0
    %202 = vmatprep.subr.mxu0 0.0
    %203 = vmatpush1.msra.mxu0 0.0
    %204 = vmatprep.subr.mxu0 0.0
    %205 = vmatpush1.msra.mxu0 0.0
    %206 = vmatprep.subr.mxu0 0.0
    %207 = vmatpush1.msra.mxu0 0.0
    %208 = vmatprep.subr.mxu0 0.0
    %209 = vmatpush1.msra.mxu0 0.0
    %210 = vmatprep.subr.mxu0 0.0
    %211 = vmatpush1.msra.mxu0 0.0
    %212 = vmatprep.subr.mxu0 0.0
    %213 = vmatpush1.msra.mxu0 0.0
    %214 = vmatprep.subr.mxu0 0.0
    %215 = vmatpush1.msra.mxu0 0.0
    %216 = vmatprep.subr.mxu0 0.0
    %217 = vmatpush1.msra.mxu0 0.0
    %218 = vmatprep.subr.mxu0 0.0
    %219 = vmatpush1.msra.mxu0 0.0
    %220 = vmatprep.subr.mxu0 0.0
    %221 = vmatpush1.msra.mxu0 0.0
    %222 = vmatprep.subr.mxu0 0.0
    %223 = vmatpush1.msra.mxu0 0.0
    %224 = vmatprep.subr.mxu0 0.0
    %225 = vmatpush1.msra.mxu0 0.0
    %226 = vmatprep.subr.mxu0 0.0
    %227 = vmatpush1.msra.mxu0 0.0
    %228 = vmatprep.subr.mxu0 0.0
    %229 = vmatpush1.msra.mxu0 0.0
    %230 = vmatprep.subr.mxu0 0.0
    %231 = vmatpush1.msra.mxu0 0.0
    %232 = vmatprep.subr.mxu0 0.0
    %233 = vmatpush1.msra.mxu0 0.0
    %234 = vmatprep.subr.mxu0 0.0
    %235 = vmatpush1.msra.mxu0 0.0
    %236 = vmatprep.subr.mxu0 0.0
    %237 = vmatpush1.msra.mxu0 0.0
    %238 = vmatprep.subr.mxu0 0.0
    %239 = vmatpush1.msra.mxu0 0.0
    %240 = vmatprep.subr.mxu0 0.0
    %241 = vmatpush1.msra.mxu0 0.0
    %242 = vmatprep.subr.mxu0 0.0
    %243 = vmatpush1.msra.mxu0 0.0
    %244 = vmatprep.subr.mxu0 0.0
    %245 = vmatpush1.msra.mxu0 0.0
    %246 = vmatprep.subr.mxu0 0.0
    %247 = vmatpush1.msra.mxu0 0.0
    %248 = vmatprep.mubr.f32.mxu0 0.0
    %249 = vmatmul.mubr.f32.gmra.mrb[0].mxu0 %v173
    %v250 = vpop.f32.mrb[0].mxu0
    %v251 = vadd.f32 0.0, %v250
    %v252 = vpop.f32.mrb[0].mxu0
    %253 = vmatprep.mubr.f32.mxu0 0.0
    %254 = vmatmul.mubr.f32.gmra.mrb[0].mxu0 %v176
    %v255 = vpop.f32.mrb[0].mxu0
    %v256 = vadd.f32 0.0, %v255
    %v257 = vpop.f32.mrb[0].mxu0
    %258 = vmatprep.mubr.f32.mxu0 0.0
    %259 = vmatmul.mubr.f32.gmra.mrb[0].mxu0 %v179
    %v260 = vpop.f32.mrb[0].mxu0
    %v261 = vadd.f32 0.0, %v260
    %v262 = vpop.f32.mrb[0].mxu0
    %263 = vmatprep.mubr.f32.mxu0 0.0
    %264 = vmatmul.mubr.f32.gmra.mrb[0].mxu0 %v182
    %v265 = vpop.f32.mrb[0].mxu0
    %v266 = vadd.f32 0.0, %v265
    %v267 = vpop.f32.mrb[0].mxu0
    %268 = vdwg.mxu0
    %271 = vrot.lane.b32.xlu0 %v251, 96
    %v272 = vpop.permute.xlu0 %271
    %273 = vrot.lane.b32.xlu0 %v256, 96
    %v274 = vpop.permute.xlu0 %273
    %v276 = vsel %vm86, %v160, 0
    %v278 = vsel %vm86, %v272, 0
    %v280 = vsel %vm86, %v274, 0
    %282 = vmatprep.subr.mxu0 0.0
    %283 = vmatpush1.xpose.msra.mxu0 %v278
    %284 = vmatprep.subr.mxu0 0.0
    %285 = vmatpush1.xpose.msra.mxu0 %v280
    %286 = vmatprep.subr.mxu0 0.0
    %287 = vmatpush1.xpose.msra.mxu0 0.0
    %288 = vmatprep.subr.mxu0 0.0
    %289 = vmatpush1.xpose.msra.mxu0 0.0
    %290 = vmatprep.subr.mxu0 0.0
    %291 = vmatpush1.xpose.msra.mxu0 0.0
    %292 = vmatprep.subr.mxu0 0.0
    %293 = vmatpush1.xpose.msra.mxu0 0.0
    %294 = vmatprep.subr.mxu0 0.0
    %295 = vmatpush1.xpose.msra.mxu0 0.0
    %296 = vmatprep.subr.mxu0 0.0
    %297 = vmatpush1.xpose.msra.mxu0 0.0
    %298 = vmatprep.subr.mxu0 0.0
    %299 = vmatpush1.xpose.msra.mxu0 0.0
    %300 = vmatprep.subr.mxu0 0.0
    %301 = vmatpush1.xpose.msra.mxu0 0.0
    %302 = vmatprep.subr.mxu0 0.0
    %303 = vmatpush1.xpose.msra.mxu0 0.0
    %304 = vmatprep.subr.mxu0 0.0
    %305 = vmatpush1.xpose.msra.mxu0 0.0
    %306 = vmatprep.subr.mxu0 0.0
    %307 = vmatpush1.xpose.msra.mxu0 0.0
    %308 = vmatprep.subr.mxu0 0.0
    %309 = vmatpush1.xpose.msra.mxu0 0.0
    %310 = vmatprep.subr.mxu0 0.0
    %311 = vmatpush1.xpose.msra.mxu0 0.0
    %312 = vmatprep.subr.mxu0 0.0
    %313 = vmatpush1.xpose.msra.mxu0 0.0
    %314 = vmatprep.subr.mxu0 0.0
    %315 = vmatpush1.xpose.msra.mxu0 0.0
    %316 = vmatprep.subr.mxu0 0.0
    %317 = vmatpush1.xpose.msra.mxu0 0.0
    %318 = vmatprep.subr.mxu0 0.0
    %319 = vmatpush1.xpose.msra.mxu0 0.0
    %320 = vmatprep.subr.mxu0 0.0
    %321 = vmatpush1.xpose.msra.mxu0 0.0
    %322 = vmatprep.subr.mxu0 0.0
    %323 = vmatpush1.xpose.msra.mxu0 0.0
    %324 = vmatprep.subr.mxu0 0.0
    %325 = vmatpush1.xpose.msra.mxu0 0.0
    %326 = vmatprep.subr.mxu0 0.0
    %327 = vmatpush1.xpose.msra.mxu0 0.0
    %328 = vmatprep.subr.mxu0 0.0
    %329 = vmatpush1.xpose.msra.mxu0 0.0
    %330 = vmatprep.subr.mxu0 0.0
    %331 = vmatpush1.xpose.msra.mxu0 0.0
    %332 = vmatprep.subr.mxu0 0.0
    %333 = vmatpush1.xpose.msra.mxu0 0.0
    %334 = vmatprep.subr.mxu0 0.0
    %335 = vmatpush1.xpose.msra.mxu0 0.0
    %336 = vmatprep.subr.mxu0 0.0
    %337 = vmatpush1.xpose.msra.mxu0 0.0
    %338 = vmatprep.subr.mxu0 0.0
    %339 = vmatpush1.xpose.msra.mxu0 0.0
    %340 = vmatprep.subr.mxu0 0.0
    %341 = vmatpush1.xpose.msra.mxu0 0.0
    %342 = vmatprep.subr.mxu0 0.0
    %343 = vmatpush1.xpose.msra.mxu0 0.0
    %344 = vmatprep.subr.mxu0 0.0
    %345 = vmatpush1.xpose.msra.mxu0 0.0
    %346 = vmatprep.mubr.f32.mxu0 0.0
    %347 = vmatmul.mubr.f32.gmra.mrb[0].mxu0 %v276
    %v348 = vpop.f32.mrb[0].mxu0
    %v349 = vadd.f32 0.0, %v348
    %v350 = vpop.f32.mrb[0].mxu0
    %351 = vdwg.mxu0
    %354 = vrot.lane.b32.xlu0 %v261, 96
    %v355 = vpop.permute.xlu0 %354
    %356 = vrot.lane.b32.xlu0 %v266, 96
    %v357 = vpop.permute.xlu0 %356
    %v359 = vsel %vm86, %v165, 0
    %v361 = vsel %vm86, %v355, 0
    %v363 = vsel %vm86, %v357, 0
    %365 = vmatprep.subr.mxu0 0.0
    %366 = vmatpush1.xpose.msra.mxu0 %v361
    %367 = vmatprep.subr.mxu0 0.0
    %368 = vmatpush1.xpose.msra.mxu0 %v363
    %369 = vmatprep.subr.mxu0 0.0
    %370 = vmatpush1.xpose.msra.mxu0 0.0
    %371 = vmatprep.subr.mxu0 0.0
    %372 = vmatpush1.xpose.msra.mxu0 0.0
    %373 = vmatprep.subr.mxu0 0.0
    %374 = vmatpush1.xpose.msra.mxu0 0.0
    %375 = vmatprep.subr.mxu0 0.0
    %376 = vmatpush1.xpose.msra.mxu0 0.0
    %377 = vmatprep.subr.mxu0 0.0
    %378 = vmatpush1.xpose.msra.mxu0 0.0
    %379 = vmatprep.subr.mxu0 0.0
    %380 = vmatpush1.xpose.msra.mxu0 0.0
    %381 = vmatprep.subr.mxu0 0.0
    %382 = vmatpush1.xpose.msra.mxu0 0.0
    %383 = vmatprep.subr.mxu0 0.0
    %384 = vmatpush1.xpose.msra.mxu0 0.0
    %385 = vmatprep.subr.mxu0 0.0
    %386 = vmatpush1.xpose.msra.mxu0 0.0
    %387 = vmatprep.subr.mxu0 0.0
    %388 = vmatpush1.xpose.msra.mxu0 0.0
    %389 = vmatprep.subr.mxu0 0.0
    %390 = vmatpush1.xpose.msra.mxu0 0.0
    %391 = vmatprep.subr.mxu0 0.0
    %392 = vmatpush1.xpose.msra.mxu0 0.0
    %393 = vmatprep.subr.mxu0 0.0
    %394 = vmatpush1.xpose.msra.mxu0 0.0
    %395 = vmatprep.subr.mxu0 0.0
    %396 = vmatpush1.xpose.msra.mxu0 0.0
    %397 = vmatprep.subr.mxu0 0.0
    %398 = vmatpush1.xpose.msra.mxu0 0.0
    %399 = vmatprep.subr.mxu0 0.0
    %400 = vmatpush1.xpose.msra.mxu0 0.0
    %401 = vmatprep.subr.mxu0 0.0
    %402 = vmatpush1.xpose.msra.mxu0 0.0
    %403 = vmatprep.subr.mxu0 0.0
    %404 = vmatpush1.xpose.msra.mxu0 0.0
    %405 = vmatprep.subr.mxu0 0.0
    %406 = vmatpush1.xpose.msra.mxu0 0.0
    %407 = vmatprep.subr.mxu0 0.0
    %408 = vmatpush1.xpose.msra.mxu0 0.0
    %409 = vmatprep.subr.mxu0 0.0
    %410 = vmatpush1.xpose.msra.mxu0 0.0
    %411 = vmatprep.subr.mxu0 0.0
    %412 = vmatpush1.xpose.msra.mxu0 0.0
    %413 = vmatprep.subr.mxu0 0.0
    %414 = vmatpush1.xpose.msra.mxu0 0.0
    %415 = vmatprep.subr.mxu0 0.0
    %416 = vmatpush1.xpose.msra.mxu0 0.0
    %417 = vmatprep.subr.mxu0 0.0
    %418 = vmatpush1.xpose.msra.mxu0 0.0
    %419 = vmatprep.subr.mxu0 0.0
    %420 = vmatpush1.xpose.msra.mxu0 0.0
    %421 = vmatprep.subr.mxu0 0.0
    %422 = vmatpush1.xpose.msra.mxu0 0.0
    %423 = vmatprep.subr.mxu0 0.0
    %424 = vmatpush1.xpose.msra.mxu0 0.0
    %425 = vmatprep.subr.mxu0 0.0
    %426 = vmatpush1.xpose.msra.mxu0 0.0
    %427 = vmatprep.subr.mxu0 0.0
    %428 = vmatpush1.xpose.msra.mxu0 0.0
    %429 = vmatprep.mubr.f32.mxu0 0.0
    %430 = vmatmul.mubr.f32.gmra.mrb[0].mxu0 %v359
    %v431 = vpop.f32.mrb[0].mxu0
    %v432 = vadd.f32 0.0, %v431
    %v433 = vpop.f32.mrb[0].mxu0
    %434 = vdwg.mxu0
    %vm435 = vcmask 130048
    %v436 = vsel %vm435, %v349, -inf
    %437 = vmax.xlane.f32.xlu0 %v436
    %v438 = vpop.xlane.xlu0 %437
    %v439 = vsel %vm435, %v432, -inf
    %440 = vmax.xlane.f32.xlu0 %v439
    %v441 = vpop.xlane.xlu0 %440
    %v442 = vsub.f32 %v349, %v438
    %v443 = vsub.f32 %v432, %v441
    %v444 = vmul.f32 %v442, 1.442695
    %v445 = vpow.pop %v444
    %v446 = vmul.f32 %v443, 1.442695
    %v447 = vpow.pop %v446
    %v448 = vsel %vm435, %v445, 0.0
    %449 = vadd.xlane.f32.xlu0 %v448
    %v450 = vpop.xlane.xlu0 %449
    %v451 = vsel %vm435, %v447, 0.0
    %452 = vadd.xlane.f32.xlu0 %v451
    %v453 = vpop.xlane.xlu0 %452
    %v454 = vrcp.pop %v450
    %v455 = vmul.f32 %v445, %v454
    %v456 = vrcp.pop %v453
    %v457 = vmul.f32 %v447, %v456
    %458 = vrot.lane.b32.xlu0 %v251, 64
    %v459 = vpop.permute.xlu0 %458
    %460 = vrot.lane.b32.xlu0 %v256, 64
    %v461 = vpop.permute.xlu0 %460
    %v465 = vsel %vm435, %v455, 0
    %467 = vmatprep.subr.mxu0 0.0
    %468 = vmatpush1.msra.mxu0 %v459
    %469 = vmatprep.subr.mxu0 0.0
    %470 = vmatpush1.msra.mxu0 %v461
    %471 = vmatprep.subr.mxu0 0.0
    %472 = vmatpush1.msra.mxu0 0.0
    %473 = vmatprep.subr.mxu0 0.0
    %474 = vmatpush1.msra.mxu0 0.0
    %475 = vmatprep.subr.mxu0 0.0
    %476 = vmatpush1.msra.mxu0 0.0
    %477 = vmatprep.subr.mxu0 0.0
    %478 = vmatpush1.msra.mxu0 0.0
    %479 = vmatprep.subr.mxu0 0.0
    %480 = vmatpush1.msra.mxu0 0.0
    %481 = vmatprep.subr.mxu0 0.0
    %482 = vmatpush1.msra.mxu0 0.0
    %483 = vmatprep.subr.mxu0 0.0
    %484 = vmatpush1.msra.mxu0 0.0
    %485 = vmatprep.subr.mxu0 0.0
    %486 = vmatpush1.msra.mxu0 0.0
    %487 = vmatprep.subr.mxu0 0.0
    %488 = vmatpush1.msra.mxu0 0.0
    %489 = vmatprep.subr.mxu0 0.0
    %490 = vmatpush1.msra.mxu0 0.0
    %491 = vmatprep.subr.mxu0 0.0
    %492 = vmatpush1.msra.mxu0 0.0
    %493 = vmatprep.subr.mxu0 0.0
    %494 = vmatpush1.msra.mxu0 0.0
    %495 = vmatprep.subr.mxu0 0.0
    %496 = vmatpush1.msra.mxu0 0.0
    %497 = vmatprep.subr.mxu0 0.0
    %498 = vmatpush1.msra.mxu0 0.0
    %499 = vmatprep.subr.mxu0 0.0
    %500 = vmatpush1.msra.mxu0 0.0
    %501 = vmatprep.subr.mxu0 0.0
    %502 = vmatpush1.msra.mxu0 0.0
    %503 = vmatprep.subr.mxu0 0.0
    %504 = vmatpush1.msra.mxu0 0.0
    %505 = vmatprep.subr.mxu0 0.0
    %506 = vmatpush1.msra.mxu0 0.0
    %507 = vmatprep.subr.mxu0 0.0
    %508 = vmatpush1.msra.mxu0 0.0
    %509 = vmatprep.subr.mxu0 0.0
    %510 = vmatpush1.msra.mxu0 0.0
    %511 = vmatprep.subr.mxu0 0.0
    %512 = vmatpush1.msra.mxu0 0.0
    %513 = vmatprep.subr.mxu0 0.0
    %514 = vmatpush1.msra.mxu0 0.0
    %515 = vmatprep.subr.mxu0 0.0
    %516 = vmatpush1.msra.mxu0 0.0
    %517 = vmatprep.subr.mxu0 0.0
    %518 = vmatpush1.msra.mxu0 0.0
    %519 = vmatprep.subr.mxu0 0.0
    %520 = vmatpush1.msra.mxu0 0.0
    %521 = vmatprep.subr.mxu0 0.0
    %522 = vmatpush1.msra.mxu0 0.0
    %523 = vmatprep.subr.mxu0 0.0
    %524 = vmatpush1.msra.mxu0 0.0
    %525 = vmatprep.subr.mxu0 0.0
    %526 = vmatpush1.msra.mxu0 0.0
    %527 = vmatprep.subr.mxu0 0.0
    %528 = vmatpush1.msra.mxu0 0.0
    %529 = vmatprep.subr.mxu0 0.0
    %530 = vmatpush1.msra.mxu0 0.0
    %531 = vmatprep.mubr.f32.mxu0 0.0
    %532 = vmatmul.mubr.f32.gmra.mrb[0].mxu0 %v465
    %v533 = vpop.f32.mrb[0].mxu0
    %v534 = vadd.f32 0.0, %v533
    %v535 = vpop.f32.mrb[0].mxu0
    %536 = vdwg.mxu0
    %537 = vrot.lane.b32.xlu0 %v261, 64
    %v538 = vpop.permute.xlu0 %537
    %539 = vrot.lane.b32.xlu0 %v266, 64
    %v540 = vpop.permute.xlu0 %539
    %v544 = vsel %vm435, %v457, 0
    %546 = vmatprep.subr.mxu0 0.0
    %547 = vmatpush1.msra.mxu0 %v538
    %548 = vmatprep.subr.mxu0 0.0
    %549 = vmatpush1.msra.mxu0 %v540
    %550 = vmatprep.subr.mxu0 0.0
    %551 = vmatpush1.msra.mxu0 0.0
    %552 = vmatprep.subr.mxu0 0.0
    %553 = vmatpush1.msra.mxu0 0.0
    %554 = vmatprep.subr.mxu0 0.0
    %555 = vmatpush1.msra.mxu0 0.0
    %556 = vmatprep.subr.mxu0 0.0
    %557 = vmatpush1.msra.mxu0 0.0
    %558 = vmatprep.subr.mxu0 0.0
    %559 = vmatpush1.msra.mxu0 0.0
    %560 = vmatprep.subr.mxu0 0.0
    %561 = vmatpush1.msra.mxu0 0.0
    %562 = vmatprep.subr.mxu0 0.0
    %563 = vmatpush1.msra.mxu0 0.0
    %564 = vmatprep.subr.mxu0 0.0
    %565 = vmatpush1.msra.mxu0 0.0
    %566 = vmatprep.subr.mxu0 0.0
    %567 = vmatpush1.msra.mxu0 0.0
    %568 = vmatprep.subr.mxu0 0.0
    %569 = vmatpush1.msra.mxu0 0.0
    %570 = vmatprep.subr.mxu0 0.0
    %571 = vmatpush1.msra.mxu0 0.0
    %572 = vmatprep.subr.mxu0 0.0
    %573 = vmatpush1.msra.mxu0 0.0
    %574 = vmatprep.subr.mxu0 0.0
    %575 = vmatpush1.msra.mxu0 0.0
    %576 = vmatprep.subr.mxu0 0.0
    %577 = vmatpush1.msra.mxu0 0.0
    %578 = vmatprep.subr.mxu0 0.0
    %579 = vmatpush1.msra.mxu0 0.0
    %580 = vmatprep.subr.mxu0 0.0
    %581 = vmatpush1.msra.mxu0 0.0
    %582 = vmatprep.subr.mxu0 0.0
    %583 = vmatpush1.msra.mxu0 0.0
    %584 = vmatprep.subr.mxu0 0.0
    %585 = vmatpush1.msra.mxu0 0.0
    %586 = vmatprep.subr.mxu0 0.0
    %587 = vmatpush1.msra.mxu0 0.0
    %588 = vmatprep.subr.mxu0 0.0
    %589 = vmatpush1.msra.mxu0 0.0
    %590 = vmatprep.subr.mxu0 0.0
    %591 = vmatpush1.msra.mxu0 0.0
    %592 = vmatprep.subr.mxu0 0.0
    %593 = vmatpush1.msra.mxu0 0.0
    %594 = vmatprep.subr.mxu0 0.0
    %595 = vmatpush1.msra.mxu0 0.0
    %596 = vmatprep.subr.mxu0 0.0
    %597 = vmatpush1.msra.mxu0 0.0
    %598 = vmatprep.subr.mxu0 0.0
    %599 = vmatpush1.msra.mxu0 0.0
    %600 = vmatprep.subr.mxu0 0.0
    %601 = vmatpush1.msra.mxu0 0.0
    %602 = vmatprep.subr.mxu0 0.0
    %603 = vmatpush1.msra.mxu0 0.0
    %604 = vmatprep.subr.mxu0 0.0
    %605 = vmatpush1.msra.mxu0 0.0
    %606 = vmatprep.subr.mxu0 0.0
    %607 = vmatpush1.msra.mxu0 0.0
    %608 = vmatprep.subr.mxu0 0.0
    %609 = vmatpush1.msra.mxu0 0.0
    %610 = vmatprep.mubr.f32.mxu0 0.0
    %611 = vmatmul.mubr.f32.gmra.mrb[0].mxu0 %v544
    %v612 = vpop.f32.mrb[0].mxu0
    %v613 = vadd.f32 0.0, %v612
    %v614 = vpop.f32.mrb[0].mxu0
    %615 = vdwg.mxu0
    %620 = vrot.lane.b32.xlu0 %v82, 32
    %v621 = vpop.permute.xlu0 %620
    %622 = vrot.lane.b32.xlu0 %v83, 32
    %v623 = vpop.permute.xlu0 %622
    %624 = vrot.lane.b32.xlu0 %v84, 32
    %v625 = vpop.permute.xlu0 %624
    %626 = vrot.lane.b32.xlu0 %v85, 32
    %v627 = vpop.permute.xlu0 %626
    %v633 = vsel %vm86, %v534, 0
    %v636 = vsel %vm86, %v613, 0
    %638 = vmatprep.subr.mxu0 0.0
    %639 = vmatpush1.msra.mxu0 %v621
    %640 = vmatprep.subr.mxu0 0.0
    %641 = vmatpush1.msra.mxu0 %v623
    %642 = vmatprep.subr.mxu0 0.0
    %643 = vmatpush1.msra.mxu0 %v625
    %644 = vmatprep.subr.mxu0 0.0
    %645 = vmatpush1.msra.mxu0 %v627
    %646 = vmatprep.subr.mxu0 0.0
    %647 = vmatpush1.msra.mxu0 0.0
    %648 = vmatprep.subr.mxu0 0.0
    %649 = vmatpush1.msra.mxu0 0.0
    %650 = vmatprep.subr.mxu0 0.0
    %651 = vmatpush1.msra.mxu0 0.0
    %652 = vmatprep.subr.mxu0 0.0
    %653 = vmatpush1.msra.mxu0 0.0
    %654 = vmatprep.subr.mxu0 0.0
    %655 = vmatpush1.msra.mxu0 0.0
    %656 = vmatprep.subr.mxu0 0.0
    %657 = vmatpush1.msra.mxu0 0.0
    %658 = vmatprep.subr.mxu0 0.0
    %659 = vmatpush1.msra.mxu0 0.0
    %660 = vmatprep.subr.mxu0 0.0
    %661 = vmatpush1.msra.mxu0 0.0
    %662 = vmatprep.subr.mxu0 0.0
    %663 = vmatpush1.msra.mxu0 0.0
    %664 = vmatprep.subr.mxu0 0.0
    %665 = vmatpush1.msra.mxu0 0.0
    %666 = vmatprep.subr.mxu0 0.0
    %667 = vmatpush1.msra.mxu0 0.0
    %668 = vmatprep.subr.mxu0 0.0
    %669 = vmatpush1.msra.mxu0 0.0
    %670 = vmatprep.subr.mxu0 0.0
    %671 = vmatpush1.msra.mxu0 0.0
    %672 = vmatprep.subr.mxu0 0.0
    %673 = vmatpush1.msra.mxu0 0.0
    %674 = vmatprep.subr.mxu0 0.0
    %675 = vmatpush1.msra.mxu0 0.0
    %676 = vmatprep.subr.mxu0 0.0
    %677 = vmatpush1.msra.mxu0 0.0
    %678 = vmatprep.subr.mxu0 0.0
    %679 = vmatpush1.msra.mxu0 0.0
    %680 = vmatprep.subr.mxu0 0.0
    %681 = vmatpush1.msra.mxu0 0.0
    %682 = vmatprep.subr.mxu0 0.0
    %683 = vmatpush1.msra.mxu0 0.0
    %684 = vmatprep.subr.mxu0 0.0
    %685 = vmatpush1.msra.mxu0 0.0
    %686 = vmatprep.subr.mxu0 0.0
    %687 = vmatpush1.msra.mxu0 0.0
    %688 = vmatprep.subr.mxu0 0.0
    %689 = vmatpush1.msra.mxu0 0.0
    %690 = vmatprep.subr.mxu0 0.0
    %691 = vmatpush1.msra.mxu0 0.0
    %692 = vmatprep.subr.mxu0 0.0
    %693 = vmatpush1.msra.mxu0 0.0
    %694 = vmatprep.subr.mxu0 0.0
    %695 = vmatpush1.msra.mxu0 0.0
    %696 = vmatprep.subr.mxu0 0.0
    %697 = vmatpush1.msra.mxu0 0.0
    %698 = vmatprep.subr.mxu0 0.0
    %699 = vmatpush1.msra.mxu0 0.0
    %700 = vmatprep.subr.mxu0 0.0
    %701 = vmatpush1.msra.mxu0 0.0
    %702 = vmatprep.mubr.f32.mxu0 0.0
    %703 = vmatmul.mubr.f32.gmra.mrb[0].mxu0 %v633
    %v704 = vpop.f32.mrb[0].mxu0
    %v705 = vadd.f32 0.0, %v704
    %v706 = vpop.f32.mrb[0].mxu0
    %707 = vmatprep.mubr.f32.mxu0 0.0
    %708 = vmatmul.mubr.f32.gmra.mrb[0].mxu0 %v636
    %v709 = vpop.f32.mrb[0].mxu0
    %v710 = vadd.f32 0.0, %v709
    %v711 = vpop.f32.mrb[0].mxu0
    %712 = vdwg.mxu0
    %713 = vst.msk [vmem:[#allocation10] sm:$0xff] %vm86, %v705
    %714 = vst.msk [vmem:[#allocation10 + $0x8] sm:$0xff] %vm86, %v710
    %715 = vrot.lane.b32.xlu0 %v160, 96
    %v716 = vpop.permute.xlu0 %715
    %v717 = vsel %vm86, %v251, 0
    %v719 = vsel %vm86, %v256, 0
    %v721 = vsel %vm86, %v716, 0
    %723 = vmatprep.subr.mxu0 0.0
    %724 = vmatpush1.xpose.msra.mxu0 %v721
    %725 = vmatprep.subr.mxu0 0.0
    %726 = vmatpush1.xpose.msra.mxu0 0.0
    %727 = vmatprep.subr.mxu0 0.0
    %728 = vmatpush1.xpose.msra.mxu0 0.0
    %729 = vmatprep.subr.mxu0 0.0
    %730 = vmatpush1.xpose.msra.mxu0 0.0
    %731 = vmatprep.subr.mxu0 0.0
    %732 = vmatpush1.xpose.msra.mxu0 0.0
    %733 = vmatprep.subr.mxu0 0.0
    %734 = vmatpush1.xpose.msra.mxu0 0.0
    %735 = vmatprep.subr.mxu0 0.0
    %736 = vmatpush1.xpose.msra.mxu0 0.0
    %737 = vmatprep.subr.mxu0 0.0
    %738 = vmatpush1.xpose.msra.mxu0 0.0
    %739 = vmatprep.subr.mxu0 0.0
    %740 = vmatpush1.xpose.msra.mxu0 0.0
    %741 = vmatprep.subr.mxu0 0.0
    %742 = vmatpush1.xpose.msra.mxu0 0.0
    %743 = vmatprep.subr.mxu0 0.0
    %744 = vmatpush1.xpose.msra.mxu0 0.0
    %745 = vmatprep.subr.mxu0 0.0
    %746 = vmatpush1.xpose.msra.mxu0 0.0
    %747 = vmatprep.subr.mxu0 0.0
    %748 = vmatpush1.xpose.msra.mxu0 0.0
    %749 = vmatprep.subr.mxu0 0.0
    %750 = vmatpush1.xpose.msra.mxu0 0.0
    %751 = vmatprep.subr.mxu0 0.0
    %752 = vmatpush1.xpose.msra.mxu0 0.0
    %753 = vmatprep.subr.mxu0 0.0
    %754 = vmatpush1.xpose.msra.mxu0 0.0
    %755 = vmatprep.subr.mxu0 0.0
    %756 = vmatpush1.xpose.msra.mxu0 0.0
    %757 = vmatprep.subr.mxu0 0.0
    %758 = vmatpush1.xpose.msra.mxu0 0.0
    %759 = vmatprep.subr.mxu0 0.0
    %760 = vmatpush1.xpose.msra.mxu0 0.0
    %761 = vmatprep.subr.mxu0 0.0
    %762 = vmatpush1.xpose.msra.mxu0 0.0
    %763 = vmatprep.subr.mxu0 0.0
    %764 = vmatpush1.xpose.msra.mxu0 0.0
    %765 = vmatprep.subr.mxu0 0.0
    %766 = vmatpush1.xpose.msra.mxu0 0.0
    %767 = vmatprep.subr.mxu0 0.0
    %768 = vmatpush1.xpose.msra.mxu0 0.0
    %769 = vmatprep.subr.mxu0 0.0
    %770 = vmatpush1.xpose.msra.mxu0 0.0
    %771 = vmatprep.subr.mxu0 0.0
    %772 = vmatpush1.xpose.msra.mxu0 0.0
    %773 = vmatprep.subr.mxu0 0.0
    %774 = vmatpush1.xpose.msra.mxu0 0.0
    %775 = vmatprep.subr.mxu0 0.0
    %776 = vmatpush1.xpose.msra.mxu0 0.0
    %777 = vmatprep.subr.mxu0 0.0
    %778 = vmatpush1.xpose.msra.mxu0 0.0
    %779 = vmatprep.subr.mxu0 0.0
    %780 = vmatpush1.xpose.msra.mxu0 0.0
    %781 = vmatprep.subr.mxu0 0.0
    %782 = vmatpush1.xpose.msra.mxu0 0.0
    %783 = vmatprep.subr.mxu0 0.0
    %784 = vmatpush1.xpose.msra.mxu0 0.0
    %785 = vmatprep.subr.mxu0 0.0
    %786 = vmatpush1.xpose.msra.mxu0 0.0
    %787 = vmatprep.mubr.f32.mxu0 0.0
    %788 = vmatmul.mubr.f32.gmra.mrb[0].mxu0 %v717
    %v789 = vpop.f32.mrb[0].mxu0
    %v790 = vadd.f32 0.0, %v789
    %v791 = vpop.f32.mrb[0].mxu0
    %792 = vmatprep.mubr.f32.mxu0 0.0
    %793 = vmatmul.mubr.f32.gmra.mrb[0].mxu0 %v719
    %v794 = vpop.f32.mrb[0].mxu0
    %v795 = vadd.f32 0.0, %v794
    %v796 = vpop.f32.mrb[0].mxu0
    %797 = vdwg.mxu0
    %798 = vrot.lane.b32.xlu0 %v165, 96
    %v799 = vpop.permute.xlu0 %798
    %v800 = vsel %vm86, %v261, 0
    %v802 = vsel %vm86, %v266, 0
    %v804 = vsel %vm86, %v799, 0
    %806 = vmatprep.subr.mxu0 0.0
    %807 = vmatpush1.xpose.msra.mxu0 %v804
    %808 = vmatprep.subr.mxu0 0.0
    %809 = vmatpush1.xpose.msra.mxu0 0.0
    %810 = vmatprep.subr.mxu0 0.0
    %811 = vmatpush1.xpose.msra.mxu0 0.0
    %812 = vmatprep.subr.mxu0 0.0
    %813 = vmatpush1.xpose.msra.mxu0 0.0
    %814 = vmatprep.subr.mxu0 0.0
    %815 = vmatpush1.xpose.msra.mxu0 0.0
    %816 = vmatprep.subr.mxu0 0.0
    %817 = vmatpush1.xpose.msra.mxu0 0.0
    %818 = vmatprep.subr.mxu0 0.0
    %819 = vmatpush1.xpose.msra.mxu0 0.0
    %820 = vmatprep.subr.mxu0 0.0
    %821 = vmatpush1.xpose.msra.mxu0 0.0
    %822 = vmatprep.subr.mxu0 0.0
    %823 = vmatpush1.xpose.msra.mxu0 0.0
    %824 = vmatprep.subr.mxu0 0.0
    %825 = vmatpush1.xpose.msra.mxu0 0.0
    %826 = vmatprep.subr.mxu0 0.0
    %827 = vmatpush1.xpose.msra.mxu0 0.0
    %828 = vmatprep.subr.mxu0 0.0
    %829 = vmatpush1.xpose.msra.mxu0 0.0
    %830 = vmatprep.subr.mxu0 0.0
    %831 = vmatpush1.xpose.msra.mxu0 0.0
    %832 = vmatprep.subr.mxu0 0.0
    %833 = vmatpush1.xpose.msra.mxu0 0.0
    %834 = vmatprep.subr.mxu0 0.0
    %835 = vmatpush1.xpose.msra.mxu0 0.0
    %836 = vmatprep.subr.mxu0 0.0
    %837 = vmatpush1.xpose.msra.mxu0 0.0
    %838 = vmatprep.subr.mxu0 0.0
    %839 = vmatpush1.xpose.msra.mxu0 0.0
    %840 = vmatprep.subr.mxu0 0.0
    %841 = vmatpush1.xpose.msra.mxu0 0.0
    %842 = vmatprep.subr.mxu0 0.0
    %843 = vmatpush1.xpose.msra.mxu0 0.0
    %844 = vmatprep.subr.mxu0 0.0
    %845 = vmatpush1.xpose.msra.mxu0 0.0
    %846 = vmatprep.subr.mxu0 0.0
    %847 = vmatpush1.xpose.msra.mxu0 0.0
    %848 = vmatprep.subr.mxu0 0.0
    %849 = vmatpush1.xpose.msra.mxu0 0.0
    %850 = vmatprep.subr.mxu0 0.0
    %851 = vmatpush1.xpose.msra.mxu0 0.0
    %852 = vmatprep.subr.mxu0 0.0
    %853 = vmatpush1.xpose.msra.mxu0 0.0
    %854 = vmatprep.subr.mxu0 0.0
    %855 = vmatpush1.xpose.msra.mxu0 0.0
    %856 = vmatprep.subr.mxu0 0.0
    %857 = vmatpush1.xpose.msra.mxu0 0.0
    %858 = vmatprep.subr.mxu0 0.0
    %859 = vmatpush1.xpose.msra.mxu0 0.0
    %860 = vmatprep.subr.mxu0 0.0
    %861 = vmatpush1.xpose.msra.mxu0 0.0
    %862 = vmatprep.subr.mxu0 0.0
    %863 = vmatpush1.xpose.msra.mxu0 0.0
    %864 = vmatprep.subr.mxu0 0.0
    %865 = vmatpush1.xpose.msra.mxu0 0.0
    %866 = vmatprep.subr.mxu0 0.0
    %867 = vmatpush1.xpose.msra.mxu0 0.0
    %868 = vmatprep.subr.mxu0 0.0
    %869 = vmatpush1.xpose.msra.mxu0 0.0
    %870 = vmatprep.mubr.f32.mxu0 0.0
    %871 = vmatmul.mubr.f32.gmra.mrb[0].mxu0 %v800
    %v872 = vpop.f32.mrb[0].mxu0
    %v873 = vadd.f32 0.0, %v872
    %v874 = vpop.f32.mrb[0].mxu0
    %875 = vmatprep.mubr.f32.mxu0 0.0
    %876 = vmatmul.mubr.f32.gmra.mrb[0].mxu0 %v802
    %v877 = vpop.f32.mrb[0].mxu0
    %v878 = vadd.f32 0.0, %v877
    %v879 = vpop.f32.mrb[0].mxu0
    %880 = vdwg.mxu0
    %vm881 = vcmask 64512
    %v882 = vsel %vm881, %v790, -inf
    %883 = vmax.xlane.f32.xlu0 %v882
    %v884 = vpop.xlane.xlu0 %883
    %v885 = vsel %vm881, %v795, -inf
    %886 = vmax.xlane.f32.xlu0 %v885
    %v887 = vpop.xlane.xlu0 %886
    %v888 = vsel %vm881, %v873, -inf
    %889 = vmax.xlane.f32.xlu0 %v888
    %v890 = vpop.xlane.xlu0 %889
    %v891 = vsel %vm881, %v878, -inf
    %892 = vmax.xlane.f32.xlu0 %v891
    %v893 = vpop.xlane.xlu0 %892
    %v894 = vsub.f32 %v790, %v884
    %v895 = vsub.f32 %v795, %v887
    %v896 = vsub.f32 %v873, %v890
    %v897 = vsub.f32 %v878, %v893
    %v898 = vmul.f32 %v894, 1.442695
    %v899 = vpow.pop %v898
    %v900 = vmul.f32 %v895, 1.442695
    %v901 = vpow.pop %v900
    %v902 = vmul.f32 %v896, 1.442695
    %v903 = vpow.pop %v902
    %v904 = vmul.f32 %v897, 1.442695
    %v905 = vpow.pop %v904
    %v906 = vsel %vm881, %v899, 0.0
    %907 = vadd.xlane.f32.xlu0 %v906
    %v908 = vpop.xlane.xlu0 %907
    %v909 = vsel %vm881, %v901, 0.0
    %910 = vadd.xlane.f32.xlu0 %v909
    %v911 = vpop.xlane.xlu0 %910
    %v912 = vsel %vm881, %v903, 0.0
    %913 = vadd.xlane.f32.xlu0 %v912
    %v914 = vpop.xlane.xlu0 %913
    %v915 = vsel %vm881, %v905, 0.0
    %916 = vadd.xlane.f32.xlu0 %v915
    %v917 = vpop.xlane.xlu0 %916
    %v918 = vrcp.pop %v908
    %v919 = vmul.f32 %v899, %v918
    %v920 = vrcp.pop %v911
    %v921 = vmul.f32 %v901, %v920
    %v922 = vrcp.pop %v914
    %v923 = vmul.f32 %v903, %v922
    %v924 = vrcp.pop %v917
    %v925 = vmul.f32 %v905, %v924
    %926 = vrot.lane.b32.xlu0 %v160, 64
    %v927 = vpop.permute.xlu0 %926
    %v930 = vsel %vm881, %v919, 0
    %v933 = vsel %vm881, %v921, 0
    %935 = vmatprep.subr.mxu0 0.0
    %936 = vmatpush1.msra.mxu0 %v927
    %937 = vmatprep.subr.mxu0 0.0
    %938 = vmatpush1.msra.mxu0 0.0
    %939 = vmatprep.subr.mxu0 0.0
    %940 = vmatpush1.msra.mxu0 0.0
    %941 = vmatprep.subr.mxu0 0.0
    %942 = vmatpush1.msra.mxu0 0.0
    %943 = vmatprep.subr.mxu0 0.0
    %944 = vmatpush1.msra.mxu0 0.0
    %945 = vmatprep.subr.mxu0 0.0
    %946 = vmatpush1.msra.mxu0 0.0
    %947 = vmatprep.subr.mxu0 0.0
    %948 = vmatpush1.msra.mxu0 0.0
    %949 = vmatprep.subr.mxu0 0.0
    %950 = vmatpush1.msra.mxu0 0.0
    %951 = vmatprep.subr.mxu0 0.0
    %952 = vmatpush1.msra.mxu0 0.0
    %953 = vmatprep.subr.mxu0 0.0
    %954 = vmatpush1.msra.mxu0 0.0
    %955 = vmatprep.subr.mxu0 0.0
    %956 = vmatpush1.msra.mxu0 0.0
    %957 = vmatprep.subr.mxu0 0.0
    %958 = vmatpush1.msra.mxu0 0.0
    %959 = vmatprep.subr.mxu0 0.0
    %960 = vmatpush1.msra.mxu0 0.0
    %961 = vmatprep.subr.mxu0 0.0
    %962 = vmatpush1.msra.mxu0 0.0
    %963 = vmatprep.subr.mxu0 0.0
    %964 = vmatpush1.msra.mxu0 0.0
    %965 = vmatprep.subr.mxu0 0.0
    %966 = vmatpush1.msra.mxu0 0.0
    %967 = vmatprep.subr.mxu0 0.0
    %968 = vmatpush1.msra.mxu0 0.0
    %969 = vmatprep.subr.mxu0 0.0
    %970 = vmatpush1.msra.mxu0 0.0
    %971 = vmatprep.subr.mxu0 0.0
    %972 = vmatpush1.msra.mxu0 0.0
    %973 = vmatprep.subr.mxu0 0.0
    %974 = vmatpush1.msra.mxu0 0.0
    %975 = vmatprep.subr.mxu0 0.0
    %976 = vmatpush1.msra.mxu0 0.0
    %977 = vmatprep.subr.mxu0 0.0
    %978 = vmatpush1.msra.mxu0 0.0
    %979 = vmatprep.subr.mxu0 0.0
    %980 = vmatpush1.msra.mxu0 0.0
    %981 = vmatprep.subr.mxu0 0.0
    %982 = vmatpush1.msra.mxu0 0.0
    %983 = vmatprep.subr.mxu0 0.0
    %984 = vmatpush1.msra.mxu0 0.0
    %985 = vmatprep.subr.mxu0 0.0
    %986 = vmatpush1.msra.mxu0 0.0
    %987 = vmatprep.subr.mxu0 0.0
    %988 = vmatpush1.msra.mxu0 0.0
    %989 = vmatprep.subr.mxu0 0.0
    %990 = vmatpush1.msra.mxu0 0.0
    %991 = vmatprep.subr.mxu0 0.0
    %992 = vmatpush1.msra.mxu0 0.0
    %993 = vmatprep.subr.mxu0 0.0
    %994 = vmatpush1.msra.mxu0 0.0
    %995 = vmatprep.subr.mxu0 0.0
    %996 = vmatpush1.msra.mxu0 0.0
    %997 = vmatprep.subr.mxu0 0.0
    %998 = vmatpush1.msra.mxu0 0.0
    %999 = vmatprep.mubr.f32.mxu0 0.0
    %1000 = vmatmul.mubr.f32.gmra.mrb[0].mxu0 %v930
    %v1001 = vpop.f32.mrb[0].mxu0
    %v1002 = vadd.f32 0.0, %v1001
    %v1003 = vpop.f32.mrb[0].mxu0
    %1004 = vmatprep.mubr.f32.mxu0 0.0
    %1005 = vmatmul.mubr.f32.gmra.mrb[0].mxu0 %v933
    %v1006 = vpop.f32.mrb[0].mxu0
    %v1007 = vadd.f32 0.0, %v1006
    %v1008 = vpop.f32.mrb[0].mxu0
    %1009 = vdwg.mxu0
    %1010 = vrot.lane.b32.xlu0 %v165, 64
    %v1011 = vpop.permute.xlu0 %1010
    %v1014 = vsel %vm881, %v923, 0
    %v1017 = vsel %vm881, %v925, 0
    %1019 = vmatprep.subr.mxu0 0.0
    %1020 = vmatpush1.msra.mxu0 %v1011
    %1021 = vmatprep.subr.mxu0 0.0
    %1022 = vmatpush1.msra.mxu0 0.0
    %1023 = vmatprep.subr.mxu0 0.0
    %1024 = vmatpush1.msra.mxu0 0.0
    %1025 = vmatprep.subr.mxu0 0.0
    %1026 = vmatpush1.msra.mxu0 0.0
    %1027 = vmatprep.subr.mxu0 0.0
    %1028 = vmatpush1.msra.mxu0 0.0
    %1029 = vmatprep.subr.mxu0 0.0
    %1030 = vmatpush1.msra.mxu0 0.0
    %1031 = vmatprep.subr.mxu0 0.0
    %1032 = vmatpush1.msra.mxu0 0.0
    %1033 = vmatprep.subr.mxu0 0.0
    %1034 = vmatpush1.msra.mxu0 0.0
    %1035 = vmatprep.subr.mxu0 0.0
    %1036 = vmatpush1.msra.mxu0 0.0
    %1037 = vmatprep.subr.mxu0 0.0
    %1038 = vmatpush1.msra.mxu0 0.0
    %1039 = vmatprep.subr.mxu0 0.0
    %1040 = vmatpush1.msra.mxu0 0.0
    %1041 = vmatprep.subr.mxu0 0.0
    %1042 = vmatpush1.msra.mxu0 0.0
    %1043 = vmatprep.subr.mxu0 0.0
    %1044 = vmatpush1.msra.mxu0 0.0
    %1045 = vmatprep.subr.mxu0 0.0
    %1046 = vmatpush1.msra.mxu0 0.0
    %1047 = vmatprep.subr.mxu0 0.0
    %1048 = vmatpush1.msra.mxu0 0.0
    %1049 = vmatprep.subr.mxu0 0.0
    %1050 = vmatpush1.msra.mxu0 0.0
    %1051 = vmatprep.subr.mxu0 0.0
    %1052 = vmatpush1.msra.mxu0 0.0
    %1053 = vmatprep.subr.mxu0 0.0
    %1054 = vmatpush1.msra.mxu0 0.0
    %1055 = vmatprep.subr.mxu0 0.0
    %1056 = vmatpush1.msra.mxu0 0.0
    %1057 = vmatprep.subr.mxu0 0.0
    %1058 = vmatpush1.msra.mxu0 0.0
    %1059 = vmatprep.subr.mxu0 0.0
    %1060 = vmatpush1.msra.mxu0 0.0
    %1061 = vmatprep.subr.mxu0 0.0
    %1062 = vmatpush1.msra.mxu0 0.0
    %1063 = vmatprep.subr.mxu0 0.0
    %1064 = vmatpush1.msra.mxu0 0.0
    %1065 = vmatprep.subr.mxu0 0.0
    %1066 = vmatpush1.msra.mxu0 0.0
    %1067 = vmatprep.subr.mxu0 0.0
    %1068 = vmatpush1.msra.mxu0 0.0
    %1069 = vmatprep.subr.mxu0 0.0
    %1070 = vmatpush1.msra.mxu0 0.0
    %1071 = vmatprep.subr.mxu0 0.0
    %1072 = vmatpush1.msra.mxu0 0.0
    %1073 = vmatprep.subr.mxu0 0.0
    %1074 = vmatpush1.msra.mxu0 0.0
    %1075 = vmatprep.subr.mxu0 0.0
    %1076 = vmatpush1.msra.mxu0 0.0
    %1077 = vmatprep.subr.mxu0 0.0
    %1078 = vmatpush1.msra.mxu0 0.0
    %1079 = vmatprep.subr.mxu0 0.0
    %1080 = vmatpush1.msra.mxu0 0.0
    %1081 = vmatprep.subr.mxu0 0.0
    %1082 = vmatpush1.msra.mxu0 0.0
    %1083 = vmatprep.mubr.f32.mxu0 0.0
    %1084 = vmatmul.mubr.f32.gmra.mrb[0].mxu0 %v1014
    %v1085 = vpop.f32.mrb[0].mxu0
    %v1086 = vadd.f32 0.0, %v1085
    %v1087 = vpop.f32.mrb[0].mxu0
    %1088 = vmatprep.mubr.f32.mxu0 0.0
    %1089 = vmatmul.mubr.f32.gmra.mrb[0].mxu0 %v1017
    %v1090 = vpop.f32.mrb[0].mxu0
    %v1091 = vadd.f32 0.0, %v1090
    %v1092 = vpop.f32.mrb[0].mxu0
    %1093 = vdwg.mxu0
    %1098 = vrot.lane.b32.xlu0 %v168, 32
    %v1099 = vpop.permute.xlu0 %1098
    %1100 = vrot.lane.b32.xlu0 %v169, 32
    %v1101 = vpop.permute.xlu0 %1100
    %1102 = vrot.lane.b32.xlu0 %v170, 32
    %v1103 = vpop.permute.xlu0 %1102
    %1104 = vrot.lane.b32.xlu0 %v171, 32
    %v1105 = vpop.permute.xlu0 %1104
    %v1111 = vsel %vm86, %v1002, 0
    %v1114 = vsel %vm86, %v1007, 0
    %v1117 = vsel %vm86, %v1086, 0
    %v1120 = vsel %vm86, %v1091, 0
    %1122 = vmatprep.subr.mxu0 0.0
    %1123 = vmatpush1.msra.mxu0 %v1099
    %1124 = vmatprep.subr.mxu0 0.0
    %1125 = vmatpush1.msra.mxu0 %v1101
    %1126 = vmatprep.subr.mxu0 0.0
    %1127 = vmatpush1.msra.mxu0 %v1103
    %1128 = vmatprep.subr.mxu0 0.0
    %1129 = vmatpush1.msra.mxu0 %v1105
    %1130 = vmatprep.subr.mxu0 0.0
    %1131 = vmatpush1.msra.mxu0 0.0
    %1132 = vmatprep.subr.mxu0 0.0
    %1133 = vmatpush1.msra.mxu0 0.0
    %1134 = vmatprep.subr.mxu0 0.0
    %1135 = vmatpush1.msra.mxu0 0.0
    %1136 = vmatprep.subr.mxu0 0.0
    %1137 = vmatpush1.msra.mxu0 0.0
    %1138 = vmatprep.subr.mxu0 0.0
    %1139 = vmatpush1.msra.mxu0 0.0
    %1140 = vmatprep.subr.mxu0 0.0
    %1141 = vmatpush1.msra.mxu0 0.0
    %1142 = vmatprep.subr.mxu0 0.0
    %1143 = vmatpush1.msra.mxu0 0.0
    %1144 = vmatprep.subr.mxu0 0.0
    %1145 = vmatpush1.msra.mxu0 0.0
    %1146 = vmatprep.subr.mxu0 0.0
    %1147 = vmatpush1.msra.mxu0 0.0
    %1148 = vmatprep.subr.mxu0 0.0
    %1149 = vmatpush1.msra.mxu0 0.0
    %1150 = vmatprep.subr.mxu0 0.0
    %1151 = vmatpush1.msra.mxu0 0.0
    %1152 = vmatprep.subr.mxu0 0.0
    %1153 = vmatpush1.msra.mxu0 0.0
    %1154 = vmatprep.subr.mxu0 0.0
    %1155 = vmatpush1.msra.mxu0 0.0
    %1156 = vmatprep.subr.mxu0 0.0
    %1157 = vmatpush1.msra.mxu0 0.0
    %1158 = vmatprep.subr.mxu0 0.0
    %1159 = vmatpush1.msra.mxu0 0.0
    %1160 = vmatprep.subr.mxu0 0.0
    %1161 = vmatpush1.msra.mxu0 0.0
    %1162 = vmatprep.subr.mxu0 0.0
    %1163 = vmatpush1.msra.mxu0 0.0
    %1164 = vmatprep.subr.mxu0 0.0
    %1165 = vmatpush1.msra.mxu0 0.0
    %1166 = vmatprep.subr.mxu0 0.0
    %1167 = vmatpush1.msra.mxu0 0.0
    %1168 = vmatprep.subr.mxu0 0.0
    %1169 = vmatpush1.msra.mxu0 0.0
    %1170 = vmatprep.subr.mxu0 0.0
    %1171 = vmatpush1.msra.mxu0 0.0
    %1172 = vmatprep.subr.mxu0 0.0
    %1173 = vmatpush1.msra.mxu0 0.0
    %1174 = vmatprep.subr.mxu0 0.0
    %1175 = vmatpush1.msra.mxu0 0.0
    %1176 = vmatprep.subr.mxu0 0.0
    %1177 = vmatpush1.msra.mxu0 0.0
    %1178 = vmatprep.subr.mxu0 0.0
    %1179 = vmatpush1.msra.mxu0 0.0
    %1180 = vmatprep.subr.mxu0 0.0
    %1181 = vmatpush1.msra.mxu0 0.0
    %1182 = vmatprep.subr.mxu0 0.0
    %1183 = vmatpush1.msra.mxu0 0.0
    %1184 = vmatprep.subr.mxu0 0.0
    %1185 = vmatpush1.msra.mxu0 0.0
    %1186 = vmatprep.mubr.f32.mxu0 0.0
    %1187 = vmatmul.mubr.f32.gmra.mrb[0].mxu0 %v1111
    %v1188 = vpop.f32.mrb[0].mxu0
    %v1189 = vadd.f32 0.0, %v1188
    %v1190 = vpop.f32.mrb[0].mxu0
    %1191 = vmatprep.mubr.f32.mxu0 0.0
    %1192 = vmatmul.mubr.f32.gmra.mrb[0].mxu0 %v1114
    %v1193 = vpop.f32.mrb[0].mxu0
    %v1194 = vadd.f32 0.0, %v1193
    %v1195 = vpop.f32.mrb[0].mxu0
    %1196 = vmatprep.mubr.f32.mxu0 0.0
    %1197 = vmatmul.mubr.f32.gmra.mrb[0].mxu0 %v1117
    %v1198 = vpop.f32.mrb[0].mxu0
    %v1199 = vadd.f32 0.0, %v1198
    %v1200 = vpop.f32.mrb[0].mxu0
    %1201 = vmatprep.mubr.f32.mxu0 0.0
    %1202 = vmatmul.mubr.f32.gmra.mrb[0].mxu0 %v1120
    %v1203 = vpop.f32.mrb[0].mxu0
    %v1204 = vadd.f32 0.0, %v1203
    %v1205 = vpop.f32.mrb[0].mxu0
    %1206 = vdwg.mxu0
    %1207 = vst.msk [vmem:[#allocation11] sm:$0xff] %vm86, %v1189
    %1208 = vst.msk [vmem:[#allocation11 + $0x8] sm:$0xff] %vm86, %v1194
    %1209 = vst.msk [vmem:[#allocation11 + $0x10] sm:$0xff] %vm86, %v1199
    %1210 = vst.msk [vmem:[#allocation11 + $0x18] sm:$0xff] %vm86, %v1204
    // Predicated region
    $region34: #{tpu_custom_call.1} parent=1 // pred_check
      _
    $region35: #{tpu_custom_call.1} parent=1 // pred_check_branch
      %1212 = sbr.rel (0) target = $region37
    $region36: #{tpu_custom_call.1} parent=1 // pred_region
      %s1214 = ssub.s32 256, 256
      %1215 = vsyncadd [#allocation4], %s1214
      %s1216 = sshll.u32 [#allocation10], 4
      %s1217 = int_to_ptr.vmem [resolvable:$true] %s1216
      %1222 = dma.vmem_to_hbm [thread:$0]  %s1217, 256, %s4, [#allocation4], 128, 128, 8
    $region37: #{tpu_custom_call.1} parent=1 // pred_fallthru
      _
    // Predicated region
    $region38: #{tpu_custom_call.1} parent=1 // pred_check
      _
    $region39: #{tpu_custom_call.1} parent=1 // pred_check_branch
      %1224 = sbr.rel (0) target = $region41
    $region40: #{tpu_custom_call.1} parent=1 // pred_region
      %s1226 = ssub.s32 512, 512
      %1227 = vsyncadd [#allocation12], %s1226
      %s1228 = sshll.u32 [#allocation11], 4
      %s1229 = int_to_ptr.vmem [resolvable:$true] %s1228
      %1234 = dma.vmem_to_hbm [thread:$0]  %s1229, 512, %s5, [#allocation12], 128, 128, 8
    $region41: #{tpu_custom_call.1} parent=1 // pred_fallthru
      _
    // Predicated region
    $region42: #{tpu_custom_call.1} parent=1 // pred_check
      _
    $region43: #{tpu_custom_call.1} parent=1 // pred_check_branch
      %1236 = sbr.rel (0) target = $region45
    $region44: #{tpu_custom_call.1} parent=1 // pred_region
      %1237 = dma.done [#allocation4], 256
    $region45: #{tpu_custom_call.1} parent=1 // pred_fallthru
      _
    // Predicated region
    $region46: #{tpu_custom_call.1} parent=1 // pred_check
      _
    $region47: #{tpu_custom_call.1} parent=1 // pred_check_branch
      %1239 = sbr.rel (0) target = $region49
    $region48: #{tpu_custom_call.1} parent=1 // pred_region
      %1240 = dma.done [#allocation12], 512
    $region49: #{tpu_custom_call.1} parent=1 // pred_fallthru
      _
    %1241 = vsyncpa [#allocation3], 1
    %1242 = vsyncpa [#allocation6], 1
    %1243 = vsyncpa [#allocation9], 1
    %1244 = vsyncpa [#allocation4], 1
    %1245 = vsyncpa [#allocation12], 1

</llo_original>
